<compile_context>
chip_gen: v6e
topology: v6e:2x2x1
jax: 0.10.0
libtpu: 0.0.40
codegen_flags: <defaults>
</compile_context>

<pallas_src>
import jax
import jax.numpy as jnp
from jax.experimental import pallas as pl
from jax.experimental.pallas import tpu as pltpu


def _conv_relu_kernel(x_ref, w_ref, b_ref, out_ref):
    """Whole scatter/parallel_apply/gather batch == one dense matmul + epilogue.

    x_ref   : VMEM (K*K*C_in, N*H*W)  bf16  tap-stacked im2col activations
    w_ref   : VMEM (C_out, K*K*C_in)  bf16  packed, unbiased (w / ps_weight)
    b_ref   : VMEM (C_out, 1)         f32   unbiased bias (b / ps_weight)
    out_ref : VMEM (C_out, N*H*W)     f32   relu(conv + bias)
    """
    acc = jnp.dot(w_ref[...], x_ref[...], preferred_element_type=jnp.float32)
    out_ref[...] = jnp.maximum(acc + b_ref[...], 0.0).astype(out_ref.dtype)


def gossip_data_parallel_forward(x_nchw, weight_oihw, bias, ps_weight,
                                 is_ps_numerator=True):
    """Forward of GossipDataParallel(Conv2d(C_in,C_out,K,pad=K//2)+ReLU).

    x_nchw      : (N, C_in, H, W) float32, PyTorch NCHW input
    weight_oihw : (C_out, C_in, K, K) float32 (ps-numerator)
    bias        : (C_out,) float32 (ps-numerator)
    ps_weight   : python float, push-sum weight held by the wrapper (> 0)
    """
    N, C_in, H, W = x_nchw.shape
    C_out, _, K, _ = weight_oihw.shape
    pad = K // 2
    HW = H * W                                 # 256 = 2*128, lane aligned
    LANES = N * HW                             # 512, lane aligned

    # unbias() only fires when params are ps-numerators; guard the transient
    # ps_weight == 0 push-sum state instead of producing inf/nan.
    if is_ps_numerator:
        assert ps_weight > 0.0, "unbias() requires ps_weight > 0"
        inv_psw = 1.0 / float(ps_weight)
    else:
        inv_psw = 1.0

    # ---- wrapper-side prep -------------------------------------------------
    # cast to bf16 BEFORE padding (half the pad bytes); single fused pad.
    x_pad = jnp.pad(x_nchw.astype(jnp.bfloat16),
                    ((0, 0), (0, 0), (pad, pad), (pad, pad)))   # (N,C_in,H+2p,W+2p)

    # Tap-stacked im2col: patch[t=(di*K+dj)][n,c,i,j] = x_pad[n,c,i+di,j+dj].
    patches = [x_pad[:, :, di:di + H, dj:dj + W]
               for di in range(K) for dj in range(K)]           # K*K x (N,C_in,H,W)
    x_cols = jnp.stack(patches, axis=1)                         # (N, K*K, C_in, H, W)
    x_cols = x_cols.reshape(N, K * K * C_in, HW)                # (N, 36, 256)
    x_cols = jnp.transpose(x_cols, (1, 0, 2)).reshape(K * K * C_in, LANES)  # (36, 512)

    # Packed weights with matching (di, dj, c) row order; unbias folded in.
    w_packed = jnp.transpose(weight_oihw, (0, 2, 3, 1)).reshape(C_out, K * K * C_in)
    w_packed = (w_packed * inv_psw).astype(jnp.bfloat16)        # (8, 36) bf16
    b_packed = (bias * inv_psw).reshape(C_out, 1).astype(jnp.float32)   # (8, 1) f32

    out = pl.pallas_call(
        _conv_relu_kernel,
        out_shape=jax.ShapeDtypeStruct((C_out, LANES), jnp.float32),
        in_specs=[
            pl.BlockSpec(memory_space=pltpu.MemorySpace.VMEM),  # x_cols
            pl.BlockSpec(memory_space=pltpu.MemorySpace.VMEM),  # w_packed
            pl.BlockSpec(memory_space=pltpu.MemorySpace.VMEM),  # bias
        ],
        out_specs=pl.BlockSpec(memory_space=pltpu.MemorySpace.VMEM),
        compiler_params=pltpu.CompilerParams(vmem_limit_bytes=16 << 20),
    )(x_cols, w_packed, b_packed)

    # Decode (C_out, N*H*W) back to NCHW (tiny XLA transpose on the output).
    return jnp.transpose(out.reshape(C_out, N, H, W), (1, 0, 2, 3))


if __name__ == "__main__":
    key = jax.random.PRNGKey(0)
    kx, kw, kb = jax.random.split(key, 3)

    N, C_in, H, W = 2, 4, 16, 16
    C_out, K = 8, 3

    x = jax.random.normal(kx, (N, C_in, H, W), jnp.float32)
    weight = jax.random.normal(kw, (C_out, C_in, K, K), jnp.float32) * 0.1
    bias = jax.random.normal(kb, (C_out,), jnp.float32) * 0.1

    # Usual post-backward state: backward hook called ps_numerator(), so the
    # forward pre-hook's unbias() divides params by ps_weight.
    ps_weight = 2.0

    y = gossip_data_parallel_forward(x, weight, bias, ps_weight,
                                     is_ps_numerator=True)
    y = jax.block_until_ready(y)

    # Reference: unbiased params fed to a standard f32 conv + bias + ReLU (NCHW).
    ref = jax.lax.conv_general_dilated(
        x, weight / ps_weight, window_strides=(1, 1),
        padding=((1, 1), (1, 1)),
        dimension_numbers=("NCHW", "OIHW", "NCHW"))
    ref = jnp.maximum(ref + (bias / ps_weight)[None, :, None, None], 0.0)

    assert y.shape == (N, C_out, H, W)
    # Tolerance accounts for bf16 MXU operands (fp32 reference / fp32 accumulation).
    assert jnp.allclose(y, ref, atol=5e-2, rtol=5e-2), \
        float(jnp.max(jnp.abs(y - ref)))
    print("KERNEL_OK")
</pallas_src>

<mosaic_0001>
module attributes {stable_mosaic.version = 11 : i64} {
  func.func @_conv_relu_kernel(%arg0: memref<36x512xbf16, #tpu.memory_space<vmem>>, %arg1: memref<8x36xbf16, #tpu.memory_space<vmem>>, %arg2: memref<8x1xf32, #tpu.memory_space<vmem>>, %arg3: memref<8x512xf32, #tpu.memory_space<vmem>>) attributes {dimension_semantics = [], scalar_prefetch = 0 : i64, scratch_operands = 0 : i64, tpu.core_type = #tpu.core_type<tc>} {
    %c0 = arith.constant 0 : index
    %c0_0 = arith.constant 0 : index
    %0 = vector.load %arg1[%c0, %c0_0] : memref<8x36xbf16, #tpu.memory_space<vmem>>, vector<8x36xbf16>
    %c0_1 = arith.constant 0 : index
    %c0_2 = arith.constant 0 : index
    %1 = vector.load %arg0[%c0_1, %c0_2] : memref<36x512xbf16, #tpu.memory_space<vmem>>, vector<36x512xbf16>
    %cst = arith.constant dense<0.000000e+00> : vector<8x512xf32>
    %2 = tpu.matmul %0, %1, %cst {dimension_numbers = #tpu.dot_dimension_numbers<[1], [0], [0], [1], [0, 0, 1, 1], [], []>} : vector<8x36xbf16>, vector<36x512xbf16>, vector<8x512xf32> -> vector<8x512xf32>
    %c0_3 = arith.constant 0 : index
    %c0_4 = arith.constant 0 : index
    %3 = vector.load %arg2[%c0_3, %c0_4] : memref<8x1xf32, #tpu.memory_space<vmem>>, vector<8x1xf32>
    %4 = vector.broadcast %3 : vector<8x1xf32> to vector<8x512xf32>
    %5 = arith.addf %2, %4 : vector<8x512xf32>
    %cst_5 = arith.constant 0.000000e+00 : f32
    %6 = vector.broadcast %cst_5 : f32 to vector<8x512xf32>
    %7 = arith.maximumf %5, %6 : vector<8x512xf32>
    %c0_6 = arith.constant 0 : index
    %c0_7 = arith.constant 0 : index
    %8 = vector.load %arg3[%c0_6, %c0_7] : memref<8x512xf32, #tpu.memory_space<vmem>>, vector<8x512xf32>
    tpu.vector_store %arg3[%c0_6, %c0_7], %7 {strides = array<i32>} : memref<8x512xf32, #tpu.memory_space<vmem>>, vector<8x512xf32>,
    return
  }
}

</mosaic_0001>

<llo_original>
// kernel: tpu_custom_call.1
$region0: #{tpu_custom_call.1}
  #allocation0 [shape = 'u32[]', space=smem, size = 0x4, offset = 0x4, fixed_abs, tag = 'smem constant byte address 0x4 - core index']
  #allocation1 [shape = 'u32[144,128]{1,0:T(1,128)}', space=vmem, size = 0x12000, scoped, tag = 'internal scratch']
  %s0 = inlined_call_operand.hbm [shape: bf16[36,512], index: 0, kind: input, shape index: {}]
  %s1 = inlined_call_operand.vmem [shape: bf16[8,36], index: 1, kind: input, shape index: {}]
  %s2 = inlined_call_operand.vmem [shape: f32[8,1], index: 2, kind: input, shape index: {}]
  %s3 = inlined_call_operand.hbm [shape: f32[8,512], index: 3, kind: output, shape index: {}]
  %s4 = sld [smem:[#allocation0]]
  $region26: #{tpu_custom_call.1} parent=0
    _
  %s6 = ssub.s32 1, %s4
  %s7 = scalar_select 0, %s6, %s4
  $region1: #{tpu_custom_call.1} parent=0
    #allocation2 [shape = 'u8[40960]{0}', space=vmem, size = 0xa000, scoped, tag = 'input window, operand 0, single buffered']
    #allocation3 [shape = 's32[1]{0}', space=sflag, size = 0x4, scoped, tag = 'scoped memory for tpu_custom_call.1']
    #allocation4 [shape = 's32[1]{0}', space=sflag, size = 0x4, scoped, tag = 'scoped memory for tpu_custom_call.1']
    #allocation5 [shape = 'u8[16384]{0}', space=vmem, size = 0x4000, scoped, tag = 'output window, operand 0, single buffered']
    %8 = vsyncpa [#allocation3], 0
    %9 = vsyncpa [#allocation4], 0
    // Predicated region
    $region2: #{tpu_custom_call.1} parent=1 // pred_check
      _
    $region3: #{tpu_custom_call.1} parent=1 // pred_check_branch
      %11 = sbr.rel (0) target = $region5
    $region4: #{tpu_custom_call.1} parent=1 // pred_region
      %s13 = ssub.s32 1280, 1280
      %14 = vsyncadd [#allocation3], %s13
      %s15 = sshll.u32 [#allocation2], 4
      %s16 = int_to_ptr.vmem [resolvable:$true] %s15
      %21 = dma.hbm_to_vmem [thread:$0]  %s0, 1280, %s16, [#allocation3], 256, 256, 16
    $region5: #{tpu_custom_call.1} parent=1 // pred_fallthru
      _
    // Predicated region
    $region6: #{tpu_custom_call.1} parent=1 // pred_check
      _
    $region7: #{tpu_custom_call.1} parent=1 // pred_check_branch
      %23 = sbr.rel (0) target = $region9
    $region8: #{tpu_custom_call.1} parent=1 // pred_region
      _
    $region9: #{tpu_custom_call.1} parent=1 // pred_fallthru
      _
    // Predicated region
    $region10: #{tpu_custom_call.1} parent=1 // pred_check
      _
    $region11: #{tpu_custom_call.1} parent=1 // pred_check_branch
      %25 = sbr.rel (0) target = $region13
    $region12: #{tpu_custom_call.1} parent=1 // pred_region
      _
    $region13: #{tpu_custom_call.1} parent=1 // pred_fallthru
      _
    // Predicated region
    $region14: #{tpu_custom_call.1} parent=1 // pred_check
      _
    $region15: #{tpu_custom_call.1} parent=1 // pred_check_branch
      %27 = sbr.rel (0) target = $region17
    $region16: #{tpu_custom_call.1} parent=1 // pred_region
      %28 = dma.done [#allocation3], 1280
    $region17: #{tpu_custom_call.1} parent=1 // pred_fallthru
      _
    %v30 = vld [vmem:[%s1] sm:$0xf]
    %v31 = vld [vmem:[#allocation2] sm:$0xff]
    %v32 = vld [vmem:[#allocation2 + $0x8] sm:$0xff]
    %v33 = vld [vmem:[#allocation2 + $0x10] sm:$0xff]
    %v34 = vld [vmem:[#allocation2 + $0x18] sm:$0xff]
    %v35 = vld [vmem:[#allocation2 + $0x20] sm:$0xff]
    %v36 = vld [vmem:[#allocation2 + $0x28] sm:$0xff]
    %v37 = vld [vmem:[#allocation2 + $0x30] sm:$0xff]
    %v38 = vld [vmem:[#allocation2 + $0x38] sm:$0xff]
    %v39 = vld [vmem:[#allocation2 + $0x40] sm:$0x33]
    %v40 = vld [vmem:[#allocation2 + $0x48] sm:$0x33]
    %v41 = vld [vmem:[%s2] sm:$0xff]
    %43 = vset.pattern.permute.xlu0 0
    %44 = vperm.xlu0 %43, %v41
    %v45 = vpop.permute.xlu0 %44
    %v57 = vunpack.c.l.b16 %v31
    %v58 = vunpack.c.h.b16 %v31
    %v59 = vunpack.c.l.b16 %v32
    %v60 = vunpack.c.h.b16 %v32
    %v61 = vunpack.c.l.b16 %v33
    %v62 = vunpack.c.h.b16 %v33
    %v63 = vunpack.c.l.b16 %v34
    %v64 = vunpack.c.h.b16 %v34
    %v65 = vunpack.c.l.b16 %v35
    %v66 = vunpack.c.h.b16 %v35
    %v67 = vunpack.c.l.b16 %v36
    %v68 = vunpack.c.h.b16 %v36
    %v69 = vunpack.c.l.b16 %v37
    %v70 = vunpack.c.h.b16 %v37
    %v71 = vunpack.c.l.b16 %v38
    %v72 = vunpack.c.h.b16 %v38
    %v73 = vunpack.c.l.b16 %v39
    %v74 = vunpack.c.h.b16 %v39
    %v75 = vunpack.c.l.b16 %v40
    %v76 = vunpack.c.h.b16 %v40
    %v77 = vpack.c.b16 %v61, %v57
    %v78 = vpack.c.b16 %v62, %v58
    %v79 = vpack.c.b16 %v63, %v59
    %v80 = vpack.c.b16 %v64, %v60
    %v81 = vpack.c.b16 %v69, %v65
    %v82 = vpack.c.b16 %v70, %v66
    %v83 = vpack.c.b16 %v71, %v67
    %v84 = vpack.c.b16 %v72, %v68
    %v85 = vpack.c.b16 %v73, %v73
    %v86 = vpack.c.b16 %v74, %v74
    %v87 = vpack.c.b16 %v75, %v75
    %v88 = vpack.c.b16 %v76, %v76
    %vm97 = vcmask 293888
    %v99 = vsel %vm97, %v30, 0
    %vm101 = vcmask 1041408
    %v103 = vsel %vm101, %v85, 0
    %v106 = vsel %vm101, %v86, 0
    %v109 = vsel %vm101, %v87, 0
    %v112 = vsel %vm101, %v88, 0
    %114 = vmatprep.subr.bf16.mxu0 0
    %115 = vmatpush1.bf16.msra.mxu0 0
    %116 = vmatprep.subr.bf16.mxu0 0
    %117 = vmatpush1.bf16.msra.mxu0 0
    %118 = vmatprep.subr.bf16.mxu0 0
    %119 = vmatpush1.bf16.msra.mxu0 0
    %120 = vmatprep.subr.bf16.mxu0 0
    %121 = vmatpush1.bf16.msra.mxu0 0
    %122 = vmatprep.subr.bf16.mxu0 0
    %123 = vmatpush1.bf16.msra.mxu0 0
    %124 = vmatprep.subr.bf16.mxu0 %v106
    %125 = vmatpush1.bf16.msra.mxu0 %v103
    %126 = vmatprep.subr.bf16.mxu0 %v82
    %127 = vmatpush1.bf16.msra.mxu0 %v81
    %128 = vmatprep.subr.bf16.mxu0 %v78
    %129 = vmatpush1.bf16.msra.mxu0 %v77
    %130 = vmatprep.subr.bf16.mxu0 0
    %131 = vmatpush2.bf16.msra.mxu0 0
    %132 = vmatprep.subr.bf16.mxu0 0
    %133 = vmatpush2.bf16.msra.mxu0 0
    %134 = vmatprep.subr.bf16.mxu0 0
    %135 = vmatpush2.bf16.msra.mxu0 0
    %136 = vmatprep.subr.bf16.mxu0 0
    %137 = vmatpush2.bf16.msra.mxu0 0
    %138 = vmatprep.subr.bf16.mxu0 0
    %139 = vmatpush2.bf16.msra.mxu0 0
    %140 = vmatprep.subr.bf16.mxu0 0
    %141 = vmatpush2.bf16.msra.mxu0 0
    %142 = vmatprep.subr.bf16.mxu0 0
    %143 = vmatpush2.bf16.msra.mxu0 0
    %144 = vmatprep.subr.bf16.mxu0 0
    %145 = vmatpush2.bf16.msra.mxu0 0
    %146 = vmatprep.mubr.bf16.mxu0 0
    %147 = vmatmul.mubr.bf16.gmra.mxu0 %v99
    %v148 = vpop.f32.mrf.mxu0
    %v149 = vadd.f32 %v45, %v148
    %v150 = vpop.f32.mrf.mxu0
    %v151 = vadd.f32 %v45, %v150
    %v152 = vpop.f32.mrf.mxu0
    %v153 = vpop.f32.mrf.mxu0
    %154 = vdwg.mxu0
    %155 = vmatprep.subr.bf16.mxu0 0
    %156 = vmatpush1.bf16.msra.mxu0 0
    %157 = vmatprep.subr.bf16.mxu0 0
    %158 = vmatpush1.bf16.msra.mxu0 0
    %159 = vmatprep.subr.bf16.mxu0 0
    %160 = vmatpush1.bf16.msra.mxu0 0
    %161 = vmatprep.subr.bf16.mxu0 0
    %162 = vmatpush1.bf16.msra.mxu0 0
    %163 = vmatprep.subr.bf16.mxu0 0
    %164 = vmatpush1.bf16.msra.mxu0 0
    %165 = vmatprep.subr.bf16.mxu0 %v112
    %166 = vmatpush1.bf16.msra.mxu0 %v109
    %167 = vmatprep.subr.bf16.mxu0 %v84
    %168 = vmatpush1.bf16.msra.mxu0 %v83
    %169 = vmatprep.subr.bf16.mxu0 %v80
    %170 = vmatpush1.bf16.msra.mxu0 %v79
    %171 = vmatprep.subr.bf16.mxu0 0
    %172 = vmatpush2.bf16.msra.mxu0 0
    %173 = vmatprep.subr.bf16.mxu0 0
    %174 = vmatpush2.bf16.msra.mxu0 0
    %175 = vmatprep.subr.bf16.mxu0 0
    %176 = vmatpush2.bf16.msra.mxu0 0
    %177 = vmatprep.subr.bf16.mxu0 0
    %178 = vmatpush2.bf16.msra.mxu0 0
    %179 = vmatprep.subr.bf16.mxu0 0
    %180 = vmatpush2.bf16.msra.mxu0 0
    %181 = vmatprep.subr.bf16.mxu0 0
    %182 = vmatpush2.bf16.msra.mxu0 0
    %183 = vmatprep.subr.bf16.mxu0 0
    %184 = vmatpush2.bf16.msra.mxu0 0
    %185 = vmatprep.subr.bf16.mxu0 0
    %186 = vmatpush2.bf16.msra.mxu0 0
    %187 = vmatprep.mubr.bf16.mxu0 0
    %188 = vmatmul.mubr.bf16.gmra.mxu0 %v99
    %v189 = vpop.f32.mrf.mxu0
    %v190 = vadd.f32 %v45, %v189
    %v191 = vpop.f32.mrf.mxu0
    %v192 = vadd.f32 %v45, %v191
    %v193 = vpop.f32.mrf.mxu0
    %v194 = vpop.f32.mrf.mxu0
    %195 = vdwg.mxu0
    %v196 = vmax.f32 %v149, 0.0
    %v197 = vmax.f32 %v151, 0.0
    %v198 = vmax.f32 %v190, 0.0
    %v199 = vmax.f32 %v192, 0.0
    %200 = vst [vmem:[#allocation5] sm:$0xff] %v196
    %201 = vst [vmem:[#allocation5 + $0x8] sm:$0xff] %v197
    %202 = vst [vmem:[#allocation5 + $0x10] sm:$0xff] %v198
    %203 = vst [vmem:[#allocation5 + $0x18] sm:$0xff] %v199
    // Predicated region
    $region18: #{tpu_custom_call.1} parent=1 // pred_check
      _
    $region19: #{tpu_custom_call.1} parent=1 // pred_check_branch
      %205 = sbr.rel (0) target = $region21
    $region20: #{tpu_custom_call.1} parent=1 // pred_region
      %s207 = ssub.s32 512, 512
      %208 = vsyncadd [#allocation4], %s207
      %s210 = sshll.u32 [#allocation5], 4
      %s211 = int_to_ptr.vmem [resolvable:$true] %s210
      %213 = dma.vmem_to_hbm [thread:$0]  %s211, 512, %s3, [#allocation4]
    $region21: #{tpu_custom_call.1} parent=1 // pred_fallthru
      _
    // Predicated region
    $region22: #{tpu_custom_call.1} parent=1 // pred_check
      _
    $region23: #{tpu_custom_call.1} parent=1 // pred_check_branch
      %215 = sbr.rel (0) target = $region25
    $region24: #{tpu_custom_call.1} parent=1 // pred_region
      %216 = dma.done [#allocation4], 512
    $region25: #{tpu_custom_call.1} parent=1 // pred_fallthru
      _
    %217 = vsyncpa [#allocation3], 1
    %218 = vsyncpa [#allocation4], 1

</llo_original>
